<compile_context>
chip_gen: v6e
topology: v6e:2x2x1
jax: 0.10.0
libtpu: 0.0.40
codegen_flags: <defaults>
</compile_context>

<pallas_src>
import functools
import numpy as np
import jax
import jax.numpy as jnp
from jax import lax
from jax.experimental import pallas as pl
from jax.experimental.pallas import tpu as pltpu

_PAIRWISE_EPS = 1e-6   # F.pairwise_distance default eps
_C_PAD = 128           # lane-dense output width
_SUB = 8
_LANE = 128


def exemplar_kernel(c_mask, niw_ref, probe_ref, emb_ref, ids_ref, w_ref, out_ref, acc_ref):
    """One (batch-tile, N-tile) grid step.

    niw_ref  : SMEM (1,)           f32  -- -1/kernel_width
    probe_ref: VMEM (1, TB, D)     f32  -- probes for this batch tile
    emb_ref  : VMEM (1, TB, TN, D) f32  -- exemplar slab (current N-tile)
    ids_ref  : VMEM (1, TB, TN)    i32  -- class id per exemplar (-1 = padding)
    w_ref    : VMEM (1, TB, TN)    f32  -- per-exemplar weight (1/N_ic, 0 for padding)
    out_ref  : VMEM (1, TB, 128)   f32  -- lane-dense padded output tile
    acc_ref  : VMEM (TB, 128)      f32  -- per-class accumulator scratch
    """
    k = pl.program_id(1)
    tb = probe_ref.shape[1]
    tn = emb_ref.shape[2]

    @pl.when(k == 0)
    def _init():
        acc_ref[...] = jnp.zeros_like(acc_ref)

    # ||probe - e + eps||^2  (direct diff form: exact, no cancellation, no MXU detour).
    diff = probe_ref[0][:, None, :] - emb_ref[0] + _PAIRWISE_EPS       # (TB, TN, D)
    d2 = jnp.sum(diff * diff, axis=-1)                                 # (TB, TN)  N lane-dense
    acts = jnp.exp(d2 * niw_ref[0])                                    # (TB, TN)  EUP, lane-dense
    wacts = acts * w_ref[0]                                            # 1/N_ic weight -> class mean

    # Per-class reduction with a small sublane-aligned class mask; padded ids=-1 never match.
    cls = lax.broadcasted_iota(jnp.int32, (tb, c_mask, tn), 1)         # (TB, c_mask, TN)
    sel = ids_ref[0][:, None, :] == cls
    per_class = jnp.sum(jnp.where(sel, wacts[:, None, :], 0.0), axis=-1)   # (TB, c_mask)

    acc_ref[:, :c_mask] += per_class

    @pl.when(k == pl.num_programs(1) - 1)
    def _store():
        out_ref[0] = acc_ref[...]          # single dense 128-lane store per batch tile


def _vmem_capacity_bytes():
    try:
        return int(pltpu.get_tpu_info().vmem_capacity_bytes)
    except Exception:
        return 64 * 1024 * 1024            # conservative (v7x-sized) fallback


def _round_up(x, m):
    return ((x + m - 1) // m) * m


def _choose_tiles(B, N, D, C):
    """Pick (tb, tn, n_pad, c_mask, vmem_limit) with a generation-aware VMEM/grid policy."""
    cap = _vmem_capacity_bytes()
    two_core = cap <= 64 * 1024 * 1024     # v7x-like: 64 MiB VMEM per TC, 2 TensorCores
    if two_core:
        vmem_limit = min(cap, 48 * 1024 * 1024)
    else:                                   # v5e / v6e: 128 MiB VMEM, single TensorCore
        vmem_limit = 100 * 1024 * 1024
    budget = int(vmem_limit * 0.85)         # in-kernel temporaries are counted explicitly below

    c_mask = min(_C_PAD, _round_up(max(C, 1), _SUB))
    d_l = _round_up(max(D, 1), _LANE)

    # N tile: keep whole N resident when small, otherwise tile in lane-aligned chunks.
    max_tn = 2048
    if N <= max_tn:
        tn, n_pad = N, N
    else:
        tn = max_tn
        n_pad = _round_up(N, tn)
    n_l = _round_up(max(tn, 1), _LANE)

    # f32 bytes per batch item per grid step: double-buffered inputs + in-kernel temporaries.
    per_item_in = 2 * 4 * (tn * d_l         # emb tile
                           + d_l            # probe
                           + 2 * n_l        # ids (i32) + weights (f32)
                           + _LANE)         # output tile
    per_item_tmp = 4 * (tn * d_l            # diff
                        + 3 * n_l           # d2 / acts / wacts
                        + c_mask * n_l      # class-mask select intermediate
                        + 2 * _LANE)        # per_class + accumulator row
    tb = max(1, min(B, budget // max(per_item_in + per_item_tmp, 1)))

    if two_core and B >= 2:
        # keep both TensorCores fed and give the pipeline ~4 grid steps per core
        kn = n_pad // tn
        want_g = min(B, max(2, -(-8 // kn)))
        tb = min(tb, -(-B // want_g))
    return int(tb), int(tn), int(n_pad), int(c_mask), int(vmem_limit)


def exemplar_forward(kernel_width, probes, emb_mats, class_ids, exemplar_weights,
                     num_classes, *, tb=None):
    """kernel_width: [1] f32; probes: [B, D]; emb_mats: [B, N, D]; class_ids: [B, N] int32;
    exemplar_weights: [B, N] f32 (1/N_ic) -> [B, C] unnormalized class likelihoods."""
    probes = probes.astype(jnp.float32)
    emb_mats = emb_mats.astype(jnp.float32)
    exemplar_weights = exemplar_weights.astype(jnp.float32)
    class_ids = class_ids.astype(jnp.int32)

    B, D = probes.shape
    _, N, _ = emb_mats.shape
    C = int(num_classes)
    assert C <= _C_PAD, "more than 128 classes would need a tiled output class axis"

    tb_auto, tn, n_pad, c_mask, vmem_limit = _choose_tiles(B, N, D, C)
    if tb is None:
        tb = tb_auto
    G = -(-B // tb)
    B_pad = G * tb
    KN = n_pad // tn

    pad_b, pad_n = B_pad - B, n_pad - N
    if pad_b or pad_n:
        probes = jnp.pad(probes, ((0, pad_b), (0, 0)))
        emb_mats = jnp.pad(emb_mats, ((0, pad_b), (0, pad_n), (0, 0)))
        class_ids = jnp.pad(class_ids, ((0, pad_b), (0, pad_n)), constant_values=-1)
        exemplar_weights = jnp.pad(exemplar_weights, ((0, pad_b), (0, pad_n)))

    probes_r = probes.reshape(G, tb, D)
    emb_r = emb_mats.reshape(G, tb, n_pad, D)
    ids_r = class_ids.reshape(G, tb, n_pad)
    w_r = exemplar_weights.reshape(G, tb, n_pad)

    # hoist the scalar: -1/width (one exact f32 divide, done once outside the kernel)
    neg_inv_w = (-1.0 / kernel_width.astype(jnp.float32)).reshape(1)

    out = pl.pallas_call(
        functools.partial(exemplar_kernel, c_mask),
        out_shape=jax.ShapeDtypeStruct((G, tb, _C_PAD), jnp.float32),
        grid_spec=pltpu.PrefetchScalarGridSpec(
            num_scalar_prefetch=0,
            grid=(G, KN),
            in_specs=[
                pl.BlockSpec(memory_space=pltpu.MemorySpace.SMEM),        # -1/width
                pl.BlockSpec((1, tb, D), lambda g, k: (g, 0, 0)),         # probes
                pl.BlockSpec((1, tb, tn, D), lambda g, k: (g, 0, k, 0)),  # exemplars (N-tiled)
                pl.BlockSpec((1, tb, tn), lambda g, k: (g, 0, k)),        # class ids
                pl.BlockSpec((1, tb, tn), lambda g, k: (g, 0, k)),        # per-exemplar weights
            ],
            out_specs=pl.BlockSpec((1, tb, _C_PAD), lambda g, k: (g, 0, 0)),
            scratch_shapes=[pltpu.VMEM((tb, _C_PAD), jnp.float32)],
        ),
        compiler_params=pltpu.CompilerParams(
            dimension_semantics=("parallel", "arbitrary"),
            vmem_limit_bytes=vmem_limit,
        ),
    )(neg_inv_w, probes_r, emb_r, ids_r, w_r)

    return out.reshape(B_pad, _C_PAD)[:B, :C]


def build_class_ids_and_weights(class_sizes, n_total):
    """class_sizes: list (len B) of lists (len C) of exemplar counts summing to n_total.
    Returns (class_ids [B, N] int32, exemplar_weights [B, N] f32 with 1/N_ic)."""
    B = len(class_sizes)
    ids = np.full((B, n_total), -1, dtype=np.int32)
    w = np.zeros((B, n_total), dtype=np.float32)
    for i, sizes in enumerate(class_sizes):
        assert sum(sizes) == n_total
        off = 0
        for c, n in enumerate(sizes):
            if n > 0:   # guard empty classes (torch .mean() of an empty split is NaN)
                ids[i, off:off + n] = c
                w[i, off:off + n] = 1.0 / n
            off += n
    return jnp.asarray(ids), jnp.asarray(w)


def reference_forward(kernel_width, probes, emb_mats, class_ids, exemplar_weights, num_classes):
    diff = probes[:, None, :] - emb_mats + _PAIRWISE_EPS
    d2 = jnp.sum(diff * diff, axis=-1)
    acts = jnp.exp(-d2 / kernel_width[0])
    onehot = (class_ids[..., None] == jnp.arange(num_classes)[None, None, :]).astype(jnp.float32)
    return jnp.einsum("bn,bn,bnc->bc", acts, exemplar_weights, onehot)


if __name__ == "__main__":
    B, D, C, N = 2, 32, 4, 32
    # per-batch-item class sizes (sum to N for every item, like torch.stack requires)
    class_sizes = [[8, 4, 12, 8], [6, 10, 8, 8]]

    key = jax.random.PRNGKey(0)
    k_probe, k_emb = jax.random.split(key)
    # scale so squared distances are O(1) relative to width=0.15 (non-degenerate test)
    probes = 0.1 * jax.random.normal(k_probe, (B, D), dtype=jnp.float32)
    emb_mats = 0.1 * jax.random.normal(k_emb, (B, N, D), dtype=jnp.float32)

    # deterministic parameter init (module __init__: width=0.15)
    kernel_width = jnp.array([0.15], dtype=jnp.float32)

    class_ids, exemplar_weights = build_class_ids_and_weights(class_sizes, N)

    out = exemplar_forward(kernel_width, probes, emb_mats, class_ids, exemplar_weights, C)
    jax.block_until_ready(out)

    ref = reference_forward(kernel_width, probes, emb_mats, class_ids, exemplar_weights, C)
    assert out.shape == (B, C)
    # direct-diff formulation matches the reference math exactly -> tight tolerance
    np.testing.assert_allclose(np.asarray(out), np.asarray(ref), rtol=1e-5, atol=1e-6)

    print("KERNEL_OK")
</pallas_src>

<mosaic_0001>
module attributes {stable_mosaic.version = 11 : i64} {
  func.func @exemplar_kernel(%arg0: i32, %arg1: i32, %arg2: memref<1xf32, #tpu.memory_space<smem>>, %arg3: memref<1x1x32xf32, #tpu.memory_space<vmem>>, %arg4: memref<1x1x32x32xf32, #tpu.memory_space<vmem>>, %arg5: memref<1x1x32xi32, #tpu.memory_space<vmem>>, %arg6: memref<1x1x32xf32, #tpu.memory_space<vmem>>, %arg7: memref<1x1x128xf32, #tpu.memory_space<vmem>>, %arg8: memref<1x128xf32, #tpu.memory_space<vmem>>) attributes {dimension_semantics = [#tpu.dimension_semantics<parallel>, #tpu.dimension_semantics<arbitrary>], iteration_bounds = array<i64: 2, 1>, scalar_prefetch = 0 : i64, scratch_operands = 1 : i64, tpu.core_type = #tpu.core_type<tc>, window_params = [{transform_indices = @transform_0, window_bounds = array<i64: 1>}, {transform_indices = @transform_1, window_bounds = array<i64: 1, 1, 32>}, {transform_indices = @transform_2, window_bounds = array<i64: 1, 1, 32, 32>}, {transform_indices = @transform_3, window_bounds = array<i64: 1, 1, 32>}, {transform_indices = @transform_4, window_bounds = array<i64: 1, 1, 32>}, {transform_indices = @transform_5, window_bounds = array<i64: 1, 1, 128>}]} {
    %c0_i32 = arith.constant 0 : i32
    %0 = arith.cmpi eq, %arg1, %c0_i32 : i32
    %1 = arith.extui %0 : i1 to i32
    %c0_i32_0 = arith.constant 0 : i32
    %2 = arith.cmpi ne, %1, %c0_i32_0 : i32
    scf.if %2 {
      %cst_23 = arith.constant 0.000000e+00 : f32
      %39 = vector.broadcast %cst_23 : f32 to vector<1x128xf32>
      %c0_24 = arith.constant 0 : index
      %c0_25 = arith.constant 0 : index
      %40 = vector.load %arg8[%c0_24, %c0_25] : memref<1x128xf32, #tpu.memory_space<vmem>>, vector<1x128xf32>
      tpu.vector_store %arg8[%c0_24, %c0_25], %39 {strides = array<i32>} : memref<1x128xf32, #tpu.memory_space<vmem>>, vector<1x128xf32>,
    } else {
    }
    %c0 = arith.constant 0 : index
    %c0_1 = arith.constant 0 : index
    %c0_2 = arith.constant 0 : index
    %3 = vector.load %arg3[%c0, %c0_1, %c0_2] : memref<1x1x32xf32, #tpu.memory_space<vmem>>, vector<1x1x32xf32>
    %4 = vector.shape_cast %3 : vector<1x1x32xf32> to vector<1x32xf32>
    %5 = vector.shape_cast %4 : vector<1x32xf32> to vector<1x1x32xf32>
    %c0_3 = arith.constant 0 : index
    %c0_4 = arith.constant 0 : index
    %c0_5 = arith.constant 0 : index
    %c0_6 = arith.constant 0 : index
    %6 = vector.load %arg4[%c0_3, %c0_4, %c0_5, %c0_6] : memref<1x1x32x32xf32, #tpu.memory_space<vmem>>, vector<1x1x32x32xf32>
    %7 = vector.shape_cast %6 : vector<1x1x32x32xf32> to vector<1x32x32xf32>
    %8 = vector.broadcast %5 : vector<1x1x32xf32> to vector<1x32x32xf32>
    %9 = arith.subf %8, %7 : vector<1x32x32xf32>
    %cst = arith.constant 9.99999997E-7 : f32
    %10 = vector.broadcast %cst : f32 to vector<1x32x32xf32>
    %11 = arith.addf %9, %10 : vector<1x32x32xf32>
    %12 = arith.mulf %11, %11 : vector<1x32x32xf32>
    %cst_7 = arith.constant dense<0.000000e+00> : vector<1x32xf32>
    %13 = vector.multi_reduction <add>, %12, %cst_7 [2] : vector<1x32x32xf32> to vector<1x32xf32>
    %c0_8 = arith.constant 0 : index
    %14 = memref.load %arg2[%c0_8] : memref<1xf32, #tpu.memory_space<smem>>
    %15 = vector.broadcast %14 : f32 to vector<1x32xf32>
    %16 = arith.mulf %13, %15 : vector<1x32xf32>
    %17 = math.exp %16 : vector<1x32xf32>
    %c0_9 = arith.constant 0 : index
    %c0_10 = arith.constant 0 : index
    %c0_11 = arith.constant 0 : index
    %18 = vector.load %arg6[%c0_9, %c0_10, %c0_11] : memref<1x1x32xf32, #tpu.memory_space<vmem>>, vector<1x1x32xf32>
    %19 = vector.shape_cast %18 : vector<1x1x32xf32> to vector<1x32xf32>
    %20 = arith.mulf %17, %19 : vector<1x32xf32>
    %21 = tpu.iota {dimensions = array<i32: 1>} : vector<1x8x32xi32>
    %c0_12 = arith.constant 0 : index
    %c0_13 = arith.constant 0 : index
    %c0_14 = arith.constant 0 : index
    %22 = vector.load %arg5[%c0_12, %c0_13, %c0_14] : memref<1x1x32xi32, #tpu.memory_space<vmem>>, vector<1x1x32xi32>
    %23 = vector.shape_cast %22 : vector<1x1x32xi32> to vector<1x32xi32>
    %24 = vector.shape_cast %23 : vector<1x32xi32> to vector<1x1x32xi32>
    %25 = vector.broadcast %24 : vector<1x1x32xi32> to vector<1x8x32xi32>
    %26 = arith.cmpi eq, %25, %21 : vector<1x8x32xi32>
    %27 = vector.shape_cast %20 : vector<1x32xf32> to vector<1x1x32xf32>
    %cst_15 = arith.constant 0.000000e+00 : f32
    %28 = vector.shape_cast %27 : vector<1x1x32xf32> to vector<1x1x32xf32>
    %29 = vector.broadcast %28 : vector<1x1x32xf32> to vector<1x8x32xf32>
    %30 = vector.broadcast %cst_15 : f32 to vector<1x8x32xf32>
    %31 = arith.select %26, %29, %30 : vector<1x8x32xi1>, vector<1x8x32xf32>
    %cst_16 = arith.constant dense<0.000000e+00> : vector<1x8xf32>
    %32 = vector.multi_reduction <add>, %31, %cst_16 [2] : vector<1x8x32xf32> to vector<1x8xf32>
    %c0_17 = arith.constant 0 : index
    %c0_18 = arith.constant 0 : index
    %33 = vector.load %arg8[%c0_17, %c0_18] : memref<1x128xf32, #tpu.memory_space<vmem>>, vector<1x8xf32>
    %34 = arith.addf %33, %32 : vector<1x8xf32>
    %c0_19 = arith.constant 0 : index
    %c0_20 = arith.constant 0 : index
    %35 = vector.load %arg8[%c0_19, %c0_20] : memref<1x128xf32, #tpu.memory_space<vmem>>, vector<1x8xf32>
    tpu.vector_store %arg8[%c0_19, %c0_20], %34 {strides = array<i32>} : memref<1x128xf32, #tpu.memory_space<vmem>>, vector<1x8xf32>,
    %c0_i32_21 = arith.constant 0 : i32
    %36 = arith.cmpi eq, %arg1, %c0_i32_21 : i32
    %37 = arith.extui %36 : i1 to i32
    %c0_i32_22 = arith.constant 0 : i32
    %38 = arith.cmpi ne, %37, %c0_i32_22 : i32
    scf.if %38 {
      %c0_23 = arith.constant 0 : index
      %c0_24 = arith.constant 0 : index
      %39 = vector.load %arg8[%c0_23, %c0_24] : memref<1x128xf32, #tpu.memory_space<vmem>>, vector<1x128xf32>
      %c0_25 = arith.constant 0 : index
      %c0_26 = arith.constant 0 : index
      %c0_27 = arith.constant 0 : index
      %40 = vector.load %arg7[%c0_25, %c0_26, %c0_27] : memref<1x1x128xf32, #tpu.memory_space<vmem>>, vector<1x1x128xf32>
      %41 = vector.shape_cast %40 : vector<1x1x128xf32> to vector<1x128xf32>
      %42 = vector.shape_cast %39 : vector<1x128xf32> to vector<1x1x128xf32>
      tpu.vector_store %arg7[%c0_25, %c0_26, %c0_27], %42 {strides = array<i32>} : memref<1x1x128xf32, #tpu.memory_space<vmem>>, vector<1x1x128xf32>,
    } else {
    }
    return
  }
  func.func @transform_0(%arg0: i32, %arg1: i32) -> i32 {
    %c0_i32 = arith.constant 0 : i32
    %c0_i32_0 = arith.constant 0 : i32
    return %c0_i32 : i32
  }
  func.func @transform_1(%arg0: i32, %arg1: i32) -> (i32, i32, i32) {
    %c0_i32 = arith.constant 0 : i32
    %c0_i32_0 = arith.constant 0 : i32
    %c0_i32_1 = arith.constant 0 : i32
    return %arg0, %c0_i32, %c0_i32_0 : i32, i32, i32
  }
  func.func @transform_2(%arg0: i32, %arg1: i32) -> (i32, i32, i32, i32) {
    %c0_i32 = arith.constant 0 : i32
    %c0_i32_0 = arith.constant 0 : i32
    %c0_i32_1 = arith.constant 0 : i32
    return %arg0, %c0_i32, %arg1, %c0_i32_0 : i32, i32, i32, i32
  }
  func.func @transform_3(%arg0: i32, %arg1: i32) -> (i32, i32, i32) {
    %c0_i32 = arith.constant 0 : i32
    %c0_i32_0 = arith.constant 0 : i32
    return %arg0, %c0_i32, %arg1 : i32, i32, i32
  }
  func.func @transform_4(%arg0: i32, %arg1: i32) -> (i32, i32, i32) {
    %c0_i32 = arith.constant 0 : i32
    %c0_i32_0 = arith.constant 0 : i32
    return %arg0, %c0_i32, %arg1 : i32, i32, i32
  }
  func.func @transform_5(%arg0: i32, %arg1: i32) -> (i32, i32, i32) {
    %c0_i32 = arith.constant 0 : i32
    %c0_i32_0 = arith.constant 0 : i32
    %c0_i32_1 = arith.constant 0 : i32
    return %arg0, %c0_i32, %c0_i32_0 : i32, i32, i32
  }
}

</mosaic_0001>

<llo_original>
// kernel: tpu_custom_call.1
$region0: #{tpu_custom_call.1}
  #allocation0 [shape = 'u32[]', space=smem, size = 0x4, offset = 0x4, fixed_abs, tag = 'smem constant byte address 0x4 - core index']
  #allocation1 [shape = 'u32[144,128]{1,0:T(1,128)}', space=vmem, size = 0x12000, scoped, tag = 'internal scratch']
  #allocation2 [shape = 'f32[1,128]{1,0:T(1,128)}', space=vmem, size = 0x200, scoped, tag = 'scratch operand']
  #allocation3 [shape = 'f32[1]{0:T(128)S(6)}', space=smem, size = 0x200, scoped, tag = 'scoped memory for tpu_custom_call.1']
  %s0 = inlined_call_operand.<no memory space> [shape: f32[1], index: 0, kind: input, shape index: {}]
  %s1 = inlined_call_operand.vmem [shape: f32[2,1,32], index: 1, kind: input, shape index: {}]
  %s2 = inlined_call_operand.hbm [shape: f32[2,1,32,32], index: 2, kind: input, shape index: {}]
  %s3 = inlined_call_operand.vmem [shape: s32[2,1,32], index: 3, kind: input, shape index: {}]
  %s4 = inlined_call_operand.vmem [shape: f32[2,1,32], index: 4, kind: input, shape index: {}]
  %s5 = inlined_call_operand.hbm [shape: f32[2,1,128], index: 5, kind: output, shape index: {}]
  %s6 = sld [smem:[#allocation0]]
  $region65: #{tpu_custom_call.1} parent=0
    _
  %s8 = ssub.s32 1, %s6
  %s9 = scalar_select 0, %s8, %s6
  %10 = sst [smem:[#allocation3]] %s0
  $region1: #{tpu_custom_call.1} parent=0
    #allocation4 [shape = 'u8[32768]{0}', space=vmem, size = 0x8000, scoped, tag = 'input window, operand 2']
    #allocation5 [shape = 's32[2]{0}', space=sflag, size = 0x8, scoped, tag = 'scoped memory for tpu_custom_call.1']
    #allocation6 [shape = 's32[2]{0}', space=sflag, size = 0x8, scoped, tag = 'scoped memory for tpu_custom_call.1']
    #allocation7 [shape = 'u8[1024]{0}', space=vmem, size = 0x400, scoped, tag = 'output window, operand 0']
    %11 = vsyncpa [#allocation5], 0
    %s12 = scalar_lea.sflag [#allocation5], 1
    %13 = vsyncpa %s12, 0
    %14 = vsyncpa [#allocation6], 0
    %s15 = scalar_lea.sflag [#allocation6], 1
    %16 = vsyncpa %s15, 0
    loop: start=0, step=1, limit=4
    $region2: #{tpu_custom_call.1} parent=1 // loop_pre_header
      _
    $region3: #{tpu_custom_call.1} parent=1 // loop_header
      %s18 = sphi 0, %s22
      %p19 = scmp.ge.s32.totalorder %s18, 4
      %s25 = sphi 0, %s37
      %s26 = sphi 0, %s33
      %s27 = sphi 0, %s25
      %s28 = sphi 0, %s26
      %s29 = sphi 0, %s27
      %s30 = sphi 0, %s28
      %s38 = sphi 0, %s38
      %s40 = sphi 0, %s38
      %s41 = sphi 0, %s40
      %s55 = sphi 0, %s41
      %s61 = sphi 0, %s63
      %s64 = sphi 0, %s61
      %s65 = sphi 0, %s64
      %s81 = sphi 0, %s65
      %s89 = sphi 0, %s91
      %s92 = sphi 0, %s89
      %s93 = sphi 0, %s92
      %s109 = sphi 0, %s93
      %s117 = sphi 0, %s119
      %s120 = sphi 0, %s117
      %s121 = sphi 0, %s120
      %s137 = sphi 0, %s121
      %s145 = sphi 0, %s147
      %s148 = sphi 0, %s145
      %s149 = sphi 0, %s148
      %s165 = sphi 0, %s149
      %s171 = sphi 0, %s173
      %s174 = sphi 0, %s171
      %s175 = sphi 0, %s174
      %s191 = sphi 0, %s175
    $region4: #{tpu_custom_call.1} parent=1 // loop_header_branch
      %21 = sbr.rel (%p19) target = $region8
    $region5: #{tpu_custom_call.1} parent=1 // loop_body
      %s23 = ssub.s32 %s18, 1
      %s24 = ssub.s32 %s18, 2
      %s31 = sadd.s32 1, %s26
      %p32 = scmp.ge.s32.totalorder %s31, 1
      %s33 = scalar_select %p32, 0, %s31
      %s34 = sadd.s32 1, %s25
      %s35 = scalar_select %p32, %s34, %s25
      %p36 = scmp.ge.s32.totalorder %s35, 2
      %s37 = scalar_select %p36, 0, %s35
      %s39 = sadd.s32 %s38, 1
      %p42 = scmp.eq.s32.totalorder %s18, 1
      %p43 = scmp.ne.s32.totalorder %s38, %s40
      %p44 = scmp.eq.s32.totalorder %s18, 0
      %p45 = por %p43, %p44
      %p46 = scmp.ne.s32.totalorder %s38, %s40
      %p47 = scmp.eq.s32.totalorder %s23, 1
      %p48 = por %p46, %p47
      %p49 = scmp.ne.s32.totalorder %s40, %s41
      %p50 = scmp.eq.s32.totalorder %s23, 0
      %p51 = por %p49, %p50
      %p52 = scmp.ne.s32.totalorder %s40, %s41
      %p53 = scmp.eq.s32.totalorder %s24, 1
      %p54 = por %p52, %p53
      %p56 = scmp.ne.s32.totalorder %s41, %s55
      %p57 = scmp.eq.s32.totalorder %s24, 0
      %p58 = por %p56, %p57
      %s59 = ssub.s32 %s25, %s37
      %p60 = scmp.eq.s32.totalorder %s59, 0
      %s62 = sadd.s32 %s61, 1
      %s63 = scalar_select %p60, %s61, %s62
      %p66 = pneg %p60
      %p67 = scmp.eq.s32.totalorder %s18, 1
      %p68 = por %p66, %p67
      %p69 = scmp.ne.s32.totalorder %s61, %s64
      %p70 = scmp.eq.s32.totalorder %s18, 0
      %p71 = por %p69, %p70
      %p72 = scmp.ne.s32.totalorder %s61, %s64
      %p73 = scmp.eq.s32.totalorder %s23, 1
      %p74 = por %p72, %p73
      %p75 = scmp.ne.s32.totalorder %s64, %s65
      %p76 = scmp.eq.s32.totalorder %s23, 0
      %p77 = por %p75, %p76
      %p78 = scmp.ne.s32.totalorder %s64, %s65
      %p79 = scmp.eq.s32.totalorder %s24, 1
      %p80 = por %p78, %p79
      %p82 = scmp.ne.s32.totalorder %s65, %s81
      %p83 = scmp.eq.s32.totalorder %s24, 0
      %p84 = por %p82, %p83
      %s85 = ssub.s32 %s25, %s37
      %s86 = ssub.s32 %s26, %s33
      %s87 = sor.u32 %s85, %s86
      %p88 = scmp.eq.s32.totalorder %s87, 0
      %s90 = sadd.s32 %s89, 1
      %s91 = scalar_select %p88, %s89, %s90
      %p94 = pneg %p88
      %p95 = scmp.eq.s32.totalorder %s18, 1
      %p96 = por %p94, %p95
      %p97 = scmp.ne.s32.totalorder %s89, %s92
      %p98 = scmp.eq.s32.totalorder %s18, 0
      %p99 = por %p97, %p98
      %p100 = scmp.ne.s32.totalorder %s89, %s92
      %p101 = scmp.eq.s32.totalorder %s23, 1
      %p102 = por %p100, %p101
      %p103 = scmp.ne.s32.totalorder %s92, %s93
      %p104 = scmp.eq.s32.totalorder %s23, 0
      %p105 = por %p103, %p104
      %p106 = scmp.ne.s32.totalorder %s92, %s93
      %p107 = scmp.eq.s32.totalorder %s24, 1
      %p108 = por %p106, %p107
      %p110 = scmp.ne.s32.totalorder %s93, %s109
      %p111 = scmp.eq.s32.totalorder %s24, 0
      %p112 = por %p110, %p111
      %s113 = ssub.s32 %s25, %s37
      %s114 = ssub.s32 %s26, %s33
      %s115 = sor.u32 %s113, %s114
      %p116 = scmp.eq.s32.totalorder %s115, 0
      %s118 = sadd.s32 %s117, 1
      %s119 = scalar_select %p116, %s117, %s118
      %p122 = pneg %p116
      %p123 = scmp.eq.s32.totalorder %s18, 1
      %p124 = por %p122, %p123
      %p125 = scmp.ne.s32.totalorder %s117, %s120
      %p126 = scmp.eq.s32.totalorder %s18, 0
      %p127 = por %p125, %p126
      %p128 = scmp.ne.s32.totalorder %s117, %s120
      %p129 = scmp.eq.s32.totalorder %s23, 1
      %p130 = por %p128, %p129
      %p131 = scmp.ne.s32.totalorder %s120, %s121
      %p132 = scmp.eq.s32.totalorder %s23, 0
      %p133 = por %p131, %p132
      %p134 = scmp.ne.s32.totalorder %s120, %s121
      %p135 = scmp.eq.s32.totalorder %s24, 1
      %p136 = por %p134, %p135
      %p138 = scmp.ne.s32.totalorder %s121, %s137
      %p139 = scmp.eq.s32.totalorder %s24, 0
      %p140 = por %p138, %p139
      %s141 = ssub.s32 %s25, %s37
      %s142 = ssub.s32 %s26, %s33
      %s143 = sor.u32 %s141, %s142
      %p144 = scmp.eq.s32.totalorder %s143, 0
      %s146 = sadd.s32 %s145, 1
      %s147 = scalar_select %p144, %s145, %s146
      %p150 = pneg %p144
      %p151 = scmp.eq.s32.totalorder %s18, 1
      %p152 = por %p150, %p151
      %p153 = scmp.ne.s32.totalorder %s145, %s148
      %p154 = scmp.eq.s32.totalorder %s18, 0
      %p155 = por %p153, %p154
      %p156 = scmp.ne.s32.totalorder %s145, %s148
      %p157 = scmp.eq.s32.totalorder %s23, 1
      %p158 = por %p156, %p157
      %p159 = scmp.ne.s32.totalorder %s148, %s149
      %p160 = scmp.eq.s32.totalorder %s23, 0
      %p161 = por %p159, %p160
      %p162 = scmp.ne.s32.totalorder %s148, %s149
      %p163 = scmp.eq.s32.totalorder %s24, 1
      %p164 = por %p162, %p163
      %p166 = scmp.ne.s32.totalorder %s149, %s165
      %p167 = scmp.eq.s32.totalorder %s24, 0
      %p168 = por %p166, %p167
      %s169 = ssub.s32 %s25, %s37
      %p170 = scmp.eq.s32.totalorder %s169, 0
      %s172 = sadd.s32 %s171, 1
      %s173 = scalar_select %p170, %s171, %s172
      %p176 = pneg %p170
      %p177 = scmp.eq.s32.totalorder %s18, 1
      %p178 = por %p176, %p177
      %p179 = scmp.ne.s32.totalorder %s171, %s174
      %p180 = scmp.eq.s32.totalorder %s18, 0
      %p181 = por %p179, %p180
      %p182 = scmp.ne.s32.totalorder %s171, %s174
      %p183 = scmp.eq.s32.totalorder %s23, 1
      %p184 = por %p182, %p183
      %p185 = scmp.ne.s32.totalorder %s174, %s175
      %p186 = scmp.eq.s32.totalorder %s23, 0
      %p187 = por %p185, %p186
      %p188 = scmp.ne.s32.totalorder %s174, %s175
      %p189 = scmp.eq.s32.totalorder %s24, 1
      %p190 = por %p188, %p189
      %p192 = scmp.ne.s32.totalorder %s175, %s191
      %p193 = scmp.eq.s32.totalorder %s24, 0
      %p194 = por %p192, %p193
      %p195 = scmp.le.s32.totalorder 1, %s18
      %p196 = scmp.lt.s32.totalorder %s18, 3
      %p197 = pnand %p195, %p196
      %p198 = pneg %p197
      // Predicated region
      $region9: #{tpu_custom_call.1} parent=5 // pred_check
        _
      $region10: #{tpu_custom_call.1} parent=5 // pred_check_branch
        %200 = sbr.rel (%p197) target = $region12
      $region11: #{tpu_custom_call.1} parent=5 // pred_region
        %s201 = ssub.s32 %s18, 1
        // Predicated region
        $region13: #{tpu_custom_call.1} parent=11 // pred_check
          %p202 = pneg %p51
        $region14: #{tpu_custom_call.1} parent=11 // pred_check_branch
          %204 = sbr.rel (%p202) target = $region16
        $region15: #{tpu_custom_call.1} parent=11 // pred_region
          _
        $region16: #{tpu_custom_call.1} parent=11 // pred_fallthru
          _
      $region12: #{tpu_custom_call.1} parent=5 // pred_fallthru
        _
      %p205 = scmp.lt.s32.totalorder %s18, 2
      // Predicated region
      $region17: #{tpu_custom_call.1} parent=5 // pred_check
        %p206 = pneg %p205
      $region18: #{tpu_custom_call.1} parent=5 // pred_check_branch
        %208 = sbr.rel (%p206) target = $region20
      $region19: #{tpu_custom_call.1} parent=5 // pred_region
        // Predicated region
        $region21: #{tpu_custom_call.1} parent=19 // pred_check
          %p209 = pneg %p71
        $region22: #{tpu_custom_call.1} parent=19 // pred_check_branch
          %211 = sbr.rel (%p209) target = $region24
        $region23: #{tpu_custom_call.1} parent=19 // pred_region
          %p212 = scmp.lt.s32.totalorder %s25, 1
          %s213 = scalar_select %p212, %s25, 1
          %s214 = scalar_lea.vmem %s1, %s213
        $region24: #{tpu_custom_call.1} parent=19 // pred_fallthru
          _
        // Predicated region
        $region25: #{tpu_custom_call.1} parent=19 // pred_check
          %p215 = pneg %p99
        $region26: #{tpu_custom_call.1} parent=19 // pred_check_branch
          %217 = sbr.rel (%p215) target = $region28
        $region27: #{tpu_custom_call.1} parent=19 // pred_region
          %s218 = sand.u32 %s89, 1
          %s219 = scalar_lea.sflag [#allocation5], %s218
          %s220 = sand.u32 %s89, 1
          %s221 = smul.addr %s220, 32
          %s222 = scalar_lea.vmem [#allocation4], %s221
          %s223 = smul.u32 4, %s26
          %s225 = ssub.s32 512, 512
          %226 = vsyncadd %s219, %s225
          %s227 = smul.addr %s25, 4
          %s228 = sadd.s32 %s223, %s227
          %s229 = smul.addr %s228, 128
          %s230 = scalar_lea.hbm %s2, %s229
          %s231 = sshll.u32 %s222, 4
          %s232 = int_to_ptr.vmem [resolvable:$true] %s231
          %237 = dma.hbm_to_vmem [thread:$0]  %s230, 512, %s232, %s219, 128, 128, 8
        $region28: #{tpu_custom_call.1} parent=19 // pred_fallthru
          _
        // Predicated region
        $region29: #{tpu_custom_call.1} parent=19 // pred_check
          %p238 = pneg %p127
        $region30: #{tpu_custom_call.1} parent=19 // pred_check_branch
          %240 = sbr.rel (%p238) target = $region32
        $region31: #{tpu_custom_call.1} parent=19 // pred_region
          %p241 = scmp.lt.s32.totalorder %s25, 1
          %s242 = scalar_select %p241, %s25, 1
          %p243 = scmp.lt.s32.totalorder %s26, 0
          %s244 = scalar_select %p243, %s26, 0
          %s245 = sadd.s32 %s244, %s242
          %s246 = scalar_lea.vmem %s3, %s245
        $region32: #{tpu_custom_call.1} parent=19 // pred_fallthru
          _
        // Predicated region
        $region33: #{tpu_custom_call.1} parent=19 // pred_check
          %p247 = pneg %p155
        $region34: #{tpu_custom_call.1} parent=19 // pred_check_branch
          %249 = sbr.rel (%p247) target = $region36
        $region35: #{tpu_custom_call.1} parent=19 // pred_region
          %p250 = scmp.lt.s32.totalorder %s25, 1
          %s251 = scalar_select %p250, %s25, 1
          %p252 = scmp.lt.s32.totalorder %s26, 0
          %s253 = scalar_select %p252, %s26, 0
          %s254 = sadd.s32 %s253, %s251
          %s255 = scalar_lea.vmem %s4, %s254
        $region36: #{tpu_custom_call.1} parent=19 // pred_fallthru
          _
      $region20: #{tpu_custom_call.1} parent=5 // pred_fallthru
        _
      %p256 = scmp.le.s32.totalorder 1, %s18
      %p257 = scmp.lt.s32.totalorder %s18, 3
      %p258 = pnand %p256, %p257
      %p259 = pneg %p258
      // Predicated region
      $region37: #{tpu_custom_call.1} parent=5 // pred_check
        _
      $region38: #{tpu_custom_call.1} parent=5 // pred_check_branch
        %261 = sbr.rel (%p258) target = $region40
      $region39: #{tpu_custom_call.1} parent=5 // pred_region
        %s262 = ssub.s32 %s18, 1
        %s263 = sand.u32 %s92, 1
        %s264 = scalar_lea.sflag [#allocation5], %s263
        %s265 = sand.u32 %s92, 1
        %s266 = smul.addr %s265, 32
        %s267 = scalar_lea.vmem [#allocation4], %s266
        // Predicated region
        $region41: #{tpu_custom_call.1} parent=39 // pred_check
          %p268 = pneg %p105
        $region42: #{tpu_custom_call.1} parent=39 // pred_check_branch
          %270 = sbr.rel (%p268) target = $region44
        $region43: #{tpu_custom_call.1} parent=39 // pred_region
          %271 = dma.done %s264, 512
        $region44: #{tpu_custom_call.1} parent=39 // pred_fallthru
          _
        %p272 = pneg %p51
        %p273 = pneg %p48
        %p274 = scmp.lt.s32.totalorder %s27, 1
        %s275 = scalar_select %p274, %s27, 1
        %s276 = scalar_lea.vmem %s1, %s275
        %p277 = pneg %p77
        %p278 = pneg %p74
        %s279 = sand.u32 %s92, 1
        %s280 = scalar_lea.sflag [#allocation5], %s279
        %s281 = sand.u32 %s92, 1
        %s282 = smul.addr %s281, 32
        %s283 = scalar_lea.vmem [#allocation4], %s282
        %p284 = pneg %p105
        %p285 = pneg %p102
        %p286 = scmp.lt.s32.totalorder %s27, 1
        %s287 = scalar_select %p286, %s27, 1
        %p288 = scmp.lt.s32.totalorder %s28, 0
        %s289 = scalar_select %p288, %s28, 0
        %s290 = sadd.s32 %s289, %s287
        %s291 = scalar_lea.vmem %s3, %s290
        %p292 = pneg %p133
        %p293 = pneg %p130
        %p294 = scmp.lt.s32.totalorder %s27, 1
        %s295 = scalar_select %p294, %s27, 1
        %p296 = scmp.lt.s32.totalorder %s28, 0
        %s297 = scalar_select %p296, %s28, 0
        %s298 = sadd.s32 %s297, %s295
        %s299 = scalar_lea.vmem %s4, %s298
        %p300 = pneg %p161
        %p301 = pneg %p158
        %p302 = pneg %p187
        %p303 = pneg %p184
        %s304 = sand.u32 %s174, 1
        %s305 = scalar_lea.sflag [#allocation6], %s304
        %s306 = sand.u32 %s174, 1
        %s307 = scalar_lea.vmem [#allocation7], %s306
        %p308 = scmp.lt.s32.totalorder %s27, 1
        %s309 = scalar_select %p308, %s27, 1
        %s310 = scalar_lea.vmem %s1, %s309
        %s311 = smul.u32 4, %s28
        %p312 = scmp.lt.s32.totalorder %s27, 1
        %s313 = scalar_select %p312, %s27, 1
        %p314 = scmp.lt.s32.totalorder %s28, 0
        %s315 = scalar_select %p314, %s28, 0
        %s316 = sadd.s32 %s315, %s313
        %s317 = scalar_lea.vmem %s3, %s316
        %p318 = scmp.lt.s32.totalorder %s27, 1
        %s319 = scalar_select %p318, %s27, 1
        %p320 = scmp.lt.s32.totalorder %s28, 0
        %s321 = scalar_select %p320, %s28, 0
        %s322 = sadd.s32 %s321, %s319
        %s323 = scalar_lea.vmem %s4, %s322
        %p324 = scmp.eq.s32.totalorder %s28, 0
        // Predicated region
        $region45: #{tpu_custom_call.1} parent=39 // pred_check
          %p325 = pneg %p324
        $region46: #{tpu_custom_call.1} parent=39 // pred_check_branch
          %327 = sbr.rel (%p325) target = $region48
        $region47: #{tpu_custom_call.1} parent=39 // pred_region
          %328 = vst [vmem:[#allocation2] sm:$0x1] 0.0
        $region48: #{tpu_custom_call.1} parent=39 // pred_fallthru
          _
        %v329 = vld [vmem:[%s310] sm:$0x1]
        %v330 = vld [vmem:[%s267] sm:$0xff]
        %v331 = vld [vmem:[%s267 + $0x8] sm:$0xff]
        %v332 = vld [vmem:[%s267 + $0x10] sm:$0xff]
        %v333 = vld [vmem:[%s267 + $0x18] sm:$0xff]
        %v335 = vlaneseq
        %v336 = vshrl.u32 %v335, 7
        %v337 = vsub.s32 0, %v336
        %v338 = vrot.slane %v329, %v337
        %v340 = vsub.f32 %v338, %v330
        %v341 = vsub.f32 %v338, %v331
        %v342 = vsub.f32 %v338, %v332
        %v343 = vsub.f32 %v338, %v333
        %v344 = vadd.f32 %v340, 1e-06
        %v345 = vadd.f32 %v341, 1e-06
        %v346 = vadd.f32 %v342, 1e-06
        %v347 = vadd.f32 %v343, 1e-06
        %v348 = vmul.f32 %v344, %v344
        %v349 = vmul.f32 %v345, %v345
        %v350 = vmul.f32 %v346, %v346
        %v351 = vmul.f32 %v347, %v347
        %vm352 = vcmask 261120
        %v353 = vsel %vm352, %v348, 0.0
        %354 = vadd.xlane.f32.xlu0 %v353
        %v355 = vpop.xlane.xlu0 %354
        %v356 = vsel %vm352, %v349, 0.0
        %357 = vadd.xlane.f32.xlu0 %v356
        %v358 = vpop.xlane.xlu0 %357
        %v359 = vsel %vm352, %v350, 0.0
        %360 = vadd.xlane.f32.xlu0 %v359
        %v361 = vpop.xlane.xlu0 %360
        %v362 = vsel %vm352, %v351, 0.0
        %363 = vadd.xlane.f32.xlu0 %v362
        %v364 = vpop.xlane.xlu0 %363
        %s365 = sld [smem:[#allocation3]]
        %v366 = vstv %s365
        %v367 = vmul.f32 %v355, %v366
        %v368 = vmul.f32 %v358, %v366
        %v369 = vmul.f32 %v361, %v366
        %v370 = vmul.f32 %v364, %v366
        %v371 = vmul.f32 %v367, 1.442695
        %v372 = vpow.pop %v371
        %v373 = vmul.f32 %v368, 1.442695
        %v374 = vpow.pop %v373
        %v375 = vmul.f32 %v369, 1.442695
        %v376 = vpow.pop %v375
        %v377 = vmul.f32 %v370, 1.442695
        %v378 = vpow.pop %v377
        %v379 = vld [vmem:[%s323] sm:$0x1]
        %v381 = vlaneseq
        %v382 = vshrl.u32 %v381, 7
        %v383 = vsub.s32 0, %v382
        %v384 = vrot.slane %v379, %v383
        %386 = vbcast.lane.b32.xlu0 %v384, 256
        %v387 = vpop.permute.xlu0 %386
        %s389 = sor.u32 256, 8
        %390 = vbcast.lane.b32.xlu0 %v384, %s389
        %v391 = vpop.permute.xlu0 %390
        %s393 = sor.u32 256, 16
        %394 = vbcast.lane.b32.xlu0 %v384, %s393
        %v395 = vpop.permute.xlu0 %394
        %s397 = sor.u32 256, 24
        %398 = vbcast.lane.b32.xlu0 %v384, %s397
        %v399 = vpop.permute.xlu0 %398
        %v404 = vmul.f32 %v372, %v387
        %v405 = vmul.f32 %v374, %v391
        %v406 = vmul.f32 %v376, %v395
        %v407 = vmul.f32 %v378, %v399
        %v408 = vlaneseq
        %v409 = vshrl.u32 %v408, 7
        %v410 = vld [vmem:[%s317] sm:$0x1]
        %v411 = vlaneseq
        %v412 = vshrl.u32 %v411, 7
        %v413 = vsub.s32 0, %v412
        %v414 = vrot.slane %v410, %v413
        %vm415 = vcmp.eq.s32.totalorder %v414, %v409
        %420 = vset.pattern.permute.xlu0 0
        %421 = vperm.xlu0 %420, %v404
        %v422 = vpop.permute.xlu0 %421
        %423 = vset.pattern.permute.xlu0 0
        %424 = vperm.xlu0 %423, %v405
        %v425 = vpop.permute.xlu0 %424
        %426 = vset.pattern.permute.xlu0 0
        %427 = vperm.xlu0 %426, %v406
        %v428 = vpop.permute.xlu0 %427
        %429 = vset.pattern.permute.xlu0 0
        %430 = vperm.xlu0 %429, %v407
        %v431 = vpop.permute.xlu0 %430
        %v432 = vlaneseq
        %v433 = vand.u32 %v432, 127
        %v434 = vlaneseq
        %v435 = vshrl.u32 %v434, 7
        %v436 = vsub.s32 %v433, %v435
        %v437 = vrot.slane %v422, %v436
        %v438 = vadd.s32 %v433, 4294967288
        %v439 = vlaneseq
        %v440 = vshrl.u32 %v439, 7
        %v441 = vsub.s32 %v438, %v440
        %v442 = vrot.slane %v425, %v441
        %vm443 = vcmask 130112
        %v444 = vsel %vm443, %v442, %v437
        %v445 = vadd.s32 %v433, 4294967280
        %v446 = vlaneseq
        %v447 = vshrl.u32 %v446, 7
        %v448 = vsub.s32 %v445, %v447
        %v449 = vrot.slane %v428, %v448
        %vm450 = vcmask 195712
        %v451 = vsel %vm450, %v449, %v444
        %v452 = vadd.s32 %v433, 4294967272
        %v453 = vlaneseq
        %v454 = vshrl.u32 %v453, 7
        %v455 = vsub.s32 %v452, %v454
        %v456 = vrot.slane %v431, %v455
        %vm457 = vcmask 261312
        %v458 = vsel %vm457, %v456, %v451
        %vm459 = vcmask 1042434
        %v460 = vsel %vm459, %v458, %v458
        %vm461 = vcmask 1043459
        %v462 = vsel %vm461, %v458, %v460
        %vm463 = vcmask 1044484
        %v464 = vsel %vm463, %v458, %v462
        %vm465 = vcmask 1045509
        %v466 = vsel %vm465, %v458, %v464
        %vm467 = vcmask 1046534
        %v468 = vsel %vm467, %v458, %v466
        %vm469 = vcmask 1047559
        %v470 = vsel %vm469, %v458, %v468
        %v472 = vsel %vm415, %v470, 0.0
        %v473 = vsel %vm352, %v472, 0.0
        %474 = vadd.xlane.f32.xlu0 %v473
        %v475 = vpop.xlane.xlu0 %474
        %v476 = vld [vmem:[#allocation2] sm:$0x1]
        %v478 = vlaneseq
        %v479 = vshrl.u32 %v478, 7
        %v480 = vsub.s32 0, %v479
        %v481 = vrot.slane %v475, %v480
        %v482 = vlaneseq
        %v483 = vshrl.u32 %v482, 7
        %v484 = vsub.s32 1, %v483
        %v485 = vrot.slane %v475, %v484
        %v486 = vlaneseq
        %v487 = vshrl.u32 %v486, 7
        %v488 = vsub.s32 2, %v487
        %v489 = vrot.slane %v475, %v488
        %v490 = vlaneseq
        %v491 = vshrl.u32 %v490, 7
        %v492 = vsub.s32 3, %v491
        %v493 = vrot.slane %v475, %v492
        %v494 = vlaneseq
        %v495 = vshrl.u32 %v494, 7
        %v496 = vsub.s32 4, %v495
        %v497 = vrot.slane %v475, %v496
        %v498 = vlaneseq
        %v499 = vshrl.u32 %v498, 7
        %v500 = vsub.s32 5, %v499
        %v501 = vrot.slane %v475, %v500
        %v502 = vlaneseq
        %v503 = vshrl.u32 %v502, 7
        %v504 = vsub.s32 6, %v503
        %v505 = vrot.slane %v475, %v504
        %v506 = vlaneseq
        %v507 = vshrl.u32 %v506, 7
        %v508 = vsub.s32 7, %v507
        %v509 = vrot.slane %v475, %v508
        %v510 = vcombine.low %v481, %v485
        %v511 = vcombine.low %v489, %v493
        %v512 = vcombine.low %v497, %v501
        %v513 = vcombine.low %v505, %v509
        %v515 = vunpack.c.l.s4 1966171168
        %v516 = vunpack.c.0.s8 %v515
        %v517 = vlaneseq
        %v518 = vshrl.u32 %v517, 7
        %v519 = vsub.s32 %v516, %v518
        %v520 = vrot.slane %v510, %v519
        %v522 = vunpack.c.l.s4 1966171168
        %v523 = vunpack.c.0.s8 %v522
        %v524 = vlaneseq
        %v525 = vshrl.u32 %v524, 7
        %v526 = vsub.s32 %v523, %v525
        %v527 = vrot.slane %v511, %v526
        %v529 = vunpack.c.l.s4 1966171168
        %v530 = vunpack.c.0.s8 %v529
        %v531 = vlaneseq
        %v532 = vshrl.u32 %v531, 7
        %v533 = vsub.s32 %v530, %v532
        %v534 = vrot.slane %v512, %v533
        %v536 = vunpack.c.l.s4 1966171168
        %v537 = vunpack.c.0.s8 %v536
        %v538 = vlaneseq
        %v539 = vshrl.u32 %v538, 7
        %v540 = vsub.s32 %v537, %v539
        %v541 = vrot.slane %v513, %v540
        %v542 = vcombine.low %v520, %v527
        %v543 = vcombine.low %v534, %v541
        %v545 = vunpack.c.l.s4 1966171168
        %v546 = vunpack.c.0.s8 %v545
        %v547 = vlaneseq
        %v548 = vshrl.u32 %v547, 7
        %v549 = vsub.s32 %v546, %v548
        %v550 = vrot.slane %v542, %v549
        %v552 = vunpack.c.l.s4 1966171168
        %v553 = vunpack.c.0.s8 %v552
        %v554 = vlaneseq
        %v555 = vshrl.u32 %v554, 7
        %v556 = vsub.s32 %v553, %v555
        %v557 = vrot.slane %v543, %v556
        %v558 = vcombine.low %v550, %v557
        %559 = vset.pattern.permute.xlu0 0
        %560 = vperm.xlu0 %559, %v558
        %v561 = vpop.permute.xlu0 %560
        %v562 = vlaneseq
        %v563 = vshrl.u32 %v562, 7
        %v564 = vsub.s32 %v433, %v563
        %v565 = vrot.slane %v561, %v564
        %v567 = vunpack.c.l.s4 1966171168
        %v568 = vunpack.c.0.s8 %v567
        %v569 = vlaneseq
        %v570 = vshrl.u32 %v569, 7
        %v571 = vsub.s32 %v568, %v570
        %v572 = vrot.slane %v565, %v571
        %v574 = vunpack.c.l.s4 1966171168
        %v575 = vunpack.c.0.s8 %v574
        %v576 = vlaneseq
        %v577 = vshrl.u32 %v576, 7
        %v578 = vsub.s32 %v575, %v577
        %v579 = vrot.slane %v572, %v578
        %v581 = vadd.f32 %v476, %v579
        %vm582 = vcmask 57344
        %583 = vst.msk [vmem:[#allocation2] sm:$0x1] %vm582, %v581
        // Predicated region
        $region49: #{tpu_custom_call.1} parent=39 // pred_check
          %p584 = pneg %p324
        $region50: #{tpu_custom_call.1} parent=39 // pred_check_branch
          %586 = sbr.rel (%p584) target = $region52
        $region51: #{tpu_custom_call.1} parent=39 // pred_region
          %v587 = vld [vmem:[#allocation2] sm:$0x1]
          %588 = vst [vmem:[%s307] sm:$0x1] %v587
        $region52: #{tpu_custom_call.1} parent=39 // pred_fallthru
          _
        %s589 = sand.u32 %s174, 1
        %s590 = scalar_lea.sflag [#allocation6], %s589
        %s591 = sand.u32 %s174, 1
        %s592 = scalar_lea.vmem [#allocation7], %s591
        // Predicated region
        $region53: #{tpu_custom_call.1} parent=39 // pred_check
          %p593 = pneg %p184
        $region54: #{tpu_custom_call.1} parent=39 // pred_check_branch
          %595 = sbr.rel (%p593) target = $region56
        $region55: #{tpu_custom_call.1} parent=39 // pred_region
          %s597 = ssub.s32 16, 16
          %598 = vsyncadd %s590, %s597
          %s599 = smul.addr %s27, 16
          %s600 = scalar_lea.hbm %s5, %s599
          %s602 = sshll.u32 %s592, 4
          %s603 = int_to_ptr.vmem [resolvable:$true] %s602
          %605 = dma.vmem_to_hbm [thread:$0]  %s603, 16, %s600, %s590
        $region56: #{tpu_custom_call.1} parent=39 // pred_fallthru
          _
      $region40: #{tpu_custom_call.1} parent=5 // pred_fallthru
        _
      %p606 = scmp.le.s32.totalorder 2, %s18
      // Predicated region
      $region57: #{tpu_custom_call.1} parent=5 // pred_check
        %p607 = pneg %p606
      $region58: #{tpu_custom_call.1} parent=5 // pred_check_branch
        %609 = sbr.rel (%p607) target = $region60
      $region59: #{tpu_custom_call.1} parent=5 // pred_region
        %s610 = ssub.s32 %s18, 2
        // Predicated region
        $region61: #{tpu_custom_call.1} parent=59 // pred_check
          %p611 = pneg %p190
        $region62: #{tpu_custom_call.1} parent=59 // pred_check_branch
          %613 = sbr.rel (%p611) target = $region64
        $region63: #{tpu_custom_call.1} parent=59 // pred_region
          %s614 = sand.u32 %s175, 1
          %s615 = scalar_lea.sflag [#allocation6], %s614
          %s616 = sand.u32 %s175, 1
          %s617 = scalar_lea.vmem [#allocation7], %s616
          %618 = dma.done %s615, 16
        $region64: #{tpu_custom_call.1} parent=59 // pred_fallthru
          _
      $region60: #{tpu_custom_call.1} parent=5 // pred_fallthru
        _
    $region6: #{tpu_custom_call.1} parent=1 // loop_footer
      %s22 = sadd.s32 1, %s18
    $region7: #{tpu_custom_call.1} parent=1 // loop_footer_branch
      %17 = sbr.rel target = $region3
    $region8: #{tpu_custom_call.1} parent=1 // loop_exit
      _
    %619 = vsyncpa [#allocation5], 1
    %s620 = scalar_lea.sflag [#allocation5], 1
    %621 = vsyncpa %s620, 1
    %622 = vsyncpa [#allocation6], 1
    %s623 = scalar_lea.sflag [#allocation6], 1
    %624 = vsyncpa %s623, 1

</llo_original>
